<compile_context>
chip_gen: v7x
topology: tpu7x:2x2x1
jax: 0.10.0
libtpu: 0.0.40
codegen_flags: <defaults>
</compile_context>

<pallas_src>
import functools

import jax
import jax.numpy as jnp
from jax.experimental import pallas as pl
from jax.experimental.pallas import tpu as pltpu

LN_EPS = 1e-5   # torch.nn.LayerNorm default eps
SUBLANE = 8     # f32 sublane packing for the row (batch) tile


def _round_up(x, m):
    return (x + m - 1) // m * m


def _vmem_capacity_bytes():
    """Physical VMEM of the local chip; conservative fallback if the query fails."""
    try:
        return int(pltpu.get_tpu_info().vmem_capacity_bytes)
    except Exception:
        return 64 << 20  # v7x physical size -- a safe lower bound across generations


def _mlp_kernel(x_ref, w1_ref, w2_ref, gamma_ref, beta_ref, o_ref):
    # x_ref: (tile_b, in_c) f32     w1_ref: (in_c, latent) bf16
    # w2_ref: (latent, out_c) bf16  gamma_ref/beta_ref: (1, out_c) f32
    # o_ref:  (tile_b, out_c) f32
    #
    # Cast x -> bf16 on the VPU inside the kernel (the DMA stays f32, cast hides under it).
    x = x_ref[...].astype(w1_ref.dtype)
    # Linear 1 (no bias): bf16 operands on the MXU, f32 accumulation.
    h = jnp.dot(x, w1_ref[...], preferred_element_type=jnp.float32)
    # SiLU in f32 (VPU mul + EUP sigmoid).
    h = h * jax.nn.sigmoid(h)
    # Linear 2 (no bias): cast activations to bf16 for the MXU, accumulate in f32.
    y = jnp.dot(h.astype(w2_ref.dtype), w2_ref[...], preferred_element_type=jnp.float32)

    # One-pass LayerNorm statistics over the true out_c (no feature padding, so no
    # correction factor).  Note: E[y^2] - mu^2 can cancel when |mu| >> sigma; it is
    # clamped at 0 and is fine with f32 accumulation at these widths.
    inv_n = jnp.float32(1.0 / y.shape[-1])
    s = jnp.sum(y, axis=-1, keepdims=True)
    sq = jnp.sum(y * y, axis=-1, keepdims=True)
    mu = s * inv_n
    var = jnp.maximum(sq * inv_n - mu * mu, 0.0)
    y_hat = (y - mu) * jax.lax.rsqrt(var + LN_EPS)
    o_ref[...] = (y_hat * gamma_ref[...] + beta_ref[...]).astype(o_ref.dtype)


def prepare_mlp_params(w1, w2, gamma, beta, *, compute_dtype=jnp.bfloat16):
    """One-time parameter prep (do this at weight-load time, not per forward call).

    w1: (in_c, latent) == torch Linear1.weight.T      w2: (latent, out_c) == Linear2.weight.T
    gamma/beta: (out_c,) LayerNorm affine params.
    """
    out_c = w2.shape[1]
    return (jnp.asarray(w1, compute_dtype),
            jnp.asarray(w2, compute_dtype),
            jnp.asarray(gamma, jnp.float32).reshape(1, out_c),
            jnp.asarray(beta, jnp.float32).reshape(1, out_c))


@functools.partial(jax.jit, static_argnames=("tile_b",))
def mlp_net(x, w1, w2, gamma, beta, *, tile_b=None):
    """Fused MLPNet forward.

    x: (B, in_c) f32; (w1, w2, gamma, beta) from prepare_mlp_params().
    Returns (B, out_c) f32.
    """
    B, in_c = x.shape
    in_c_w, latent = w1.shape
    latent_w, out_c = w2.shape
    assert in_c_w == in_c and latent_w == latent

    # --- Batch tile: one grid step for small/medium B (single-TC v5e/v6e: the grid is a
    # serial loop, so extra steps only add per-step overhead); 512-row tiles for large B.
    if tile_b is None:
        tile_b = _round_up(B, SUBLANE) if B <= 1024 else 512
    tile_b = _round_up(int(tile_b), SUBLANE)
    B_pad = _round_up(B, tile_b)
    xp = x if B_pad == B else jnp.pad(x, ((0, B_pad - B), (0, 0)))

    grid = (B_pad // tile_b,)

    # --- VMEM budget: double-buffered x/out tiles + resident bf16 weights + f32 temps,
    # capped at ~75% of the chip's physical VMEM (leaves headroom on v7x's 64 MiB,
    # exploits v5e/v6e's 128 MiB when tiles grow).
    wbytes = jnp.dtype(w1.dtype).itemsize
    est = (2 * tile_b * (in_c + out_c) * 4                   # pipelined x / out tiles (f32)
           + 2 * (in_c * latent + latent * out_c) * wbytes   # weights
           + 2 * 2 * out_c * 4                               # gamma / beta
           + tile_b * (latent + out_c) * 4)                  # h, y intermediates
    vmem_limit = int(min(_vmem_capacity_bytes() * 3 // 4, max(16 << 20, 2 * est)))

    # Portable semantics: "arbitrary" for a 1-step grid, "parallel" otherwise.  On v7x
    # (2 TensorCores) CORE_PARALLEL on an even batch grid shards the axis across cores.
    semantics = ("arbitrary",) if grid[0] == 1 else ("parallel",)

    out = pl.pallas_call(
        _mlp_kernel,
        out_shape=jax.ShapeDtypeStruct((B_pad, out_c), jnp.float32),
        grid_spec=pltpu.PrefetchScalarGridSpec(
            num_scalar_prefetch=0,
            grid=grid,
            in_specs=[
                pl.BlockSpec((tile_b, in_c), lambda i: (i, 0)),    # x row tile (pipelined, f32)
                pl.BlockSpec((in_c, latent), lambda i: (0, 0)),    # W1 (resident, bf16)
                pl.BlockSpec((latent, out_c), lambda i: (0, 0)),   # W2 (resident, bf16)
                pl.BlockSpec((1, out_c), lambda i: (0, 0)),        # gamma
                pl.BlockSpec((1, out_c), lambda i: (0, 0)),        # beta
            ],
            out_specs=pl.BlockSpec((tile_b, out_c), lambda i: (i, 0)),
        ),
        compiler_params=pltpu.CompilerParams(
            dimension_semantics=semantics,
            vmem_limit_bytes=vmem_limit,
        ),
    )(xp, w1, w2, gamma, beta)

    return out if B_pad == B else out[:B]


def reference_mlp(x, w1, w2, gamma, beta, *, compute_dtype=jnp.float32):
    """Pure-JAX reference. compute_dtype=bf16 mirrors the kernel's MXU numerics."""
    xc = x.astype(compute_dtype)
    w1c = w1.astype(compute_dtype)
    w2c = w2.astype(compute_dtype)
    h = jnp.dot(xc, w1c, preferred_element_type=jnp.float32)
    h = h * jax.nn.sigmoid(h)
    y = jnp.dot(h.astype(compute_dtype), w2c, preferred_element_type=jnp.float32)
    mu = jnp.mean(y, axis=-1, keepdims=True)
    var = jnp.mean((y - mu) ** 2, axis=-1, keepdims=True)
    return (y - mu) * jax.lax.rsqrt(var + LN_EPS) * gamma + beta


if __name__ == "__main__":
    # Shapes consistent with MLPNet(in_channels=32, out_channels=32, latent_dims=64).
    B, in_c, latent, out_c = 64, 32, 64, 32

    key = jax.random.PRNGKey(0)
    kx, k1, k2 = jax.random.split(key, 3)

    x = jax.random.normal(kx, (B, in_c), dtype=jnp.float32)
    # Mimic torch Linear's uniform(-1/sqrt(fan_in), +1/sqrt(fan_in)) init.
    w1 = jax.random.uniform(k1, (in_c, latent), jnp.float32,
                            minval=-1.0 / jnp.sqrt(in_c), maxval=1.0 / jnp.sqrt(in_c))
    w2 = jax.random.uniform(k2, (latent, out_c), jnp.float32,
                            minval=-1.0 / jnp.sqrt(latent), maxval=1.0 / jnp.sqrt(latent))
    gamma = jnp.ones((out_c,), jnp.float32)    # nn.LayerNorm default weight
    beta = jnp.zeros((out_c,), jnp.float32)    # nn.LayerNorm default bias

    # One-time weight prep (bf16 cast + gamma/beta reshape), hoisted out of the forward.
    w1p, w2p, gamma_p, beta_p = prepare_mlp_params(w1, w2, gamma, beta)

    out = jax.block_until_ready(mlp_net(x, w1p, w2p, gamma_p, beta_p))
    assert out.shape == (B, out_c)

    # Tight check vs a reference that mirrors the kernel's bf16-operand / f32-accum numerics.
    ref_bf16 = reference_mlp(x, w1, w2, gamma, beta, compute_dtype=jnp.bfloat16)
    assert jnp.allclose(out, ref_bf16, atol=5e-3, rtol=5e-3), "mismatch vs bf16-compute reference"

    # Loose check vs the full-f32 torch-equivalent reference (bf16 MXU precision tradeoff).
    ref_f32 = reference_mlp(x, w1, w2, gamma, beta, compute_dtype=jnp.float32)
    assert jnp.allclose(out, ref_f32, atol=1e-1, rtol=1e-1), "mismatch vs f32 reference"

    print("KERNEL_OK")
</pallas_src>

<mosaic_0001>
module attributes {stable_mosaic.version = 11 : i64} {
  func.func @_mlp_kernel(%arg0: i32, %arg1: memref<64x32xf32, #tpu.memory_space<vmem>>, %arg2: memref<32x64xbf16, #tpu.memory_space<vmem>>, %arg3: memref<64x32xbf16, #tpu.memory_space<vmem>>, %arg4: memref<1x32xf32, #tpu.memory_space<vmem>>, %arg5: memref<1x32xf32, #tpu.memory_space<vmem>>, %arg6: memref<64x32xf32, #tpu.memory_space<vmem>>) attributes {dimension_semantics = [#tpu.dimension_semantics<arbitrary>], iteration_bounds = array<i64: 1>, scalar_prefetch = 0 : i64, scratch_operands = 0 : i64, tpu.core_type = #tpu.core_type<tc>, window_params = [{transform_indices = @transform_0, window_bounds = array<i64: 64, 32>}, {pipeline_mode = #tpu.pipeline_mode<synchronous>, transform_indices = @transform_1, window_bounds = array<i64: 32, 64>}, {pipeline_mode = #tpu.pipeline_mode<synchronous>, transform_indices = @transform_2, window_bounds = array<i64: 64, 32>}, {pipeline_mode = #tpu.pipeline_mode<synchronous>, transform_indices = @transform_3, window_bounds = array<i64: 1, 32>}, {pipeline_mode = #tpu.pipeline_mode<synchronous>, transform_indices = @transform_4, window_bounds = array<i64: 1, 32>}, {transform_indices = @transform_5, window_bounds = array<i64: 64, 32>}]} {
    %c0 = arith.constant 0 : index
    %c0_0 = arith.constant 0 : index
    %0 = vector.load %arg1[%c0, %c0_0] : memref<64x32xf32, #tpu.memory_space<vmem>>, vector<64x32xf32>
    %1 = arith.truncf %0 : vector<64x32xf32> to vector<64x32xbf16>
    %c0_1 = arith.constant 0 : index
    %c0_2 = arith.constant 0 : index
    %2 = vector.load %arg2[%c0_1, %c0_2] : memref<32x64xbf16, #tpu.memory_space<vmem>>, vector<32x64xbf16>
    %cst = arith.constant dense<0.000000e+00> : vector<64x64xf32>
    %3 = tpu.matmul %1, %2, %cst {dimension_numbers = #tpu.dot_dimension_numbers<[1], [0], [0], [1], [0, 0, 1, 1], [], []>} : vector<64x32xbf16>, vector<32x64xbf16>, vector<64x64xf32> -> vector<64x64xf32>
    %4 = arith.negf %3 : vector<64x64xf32>
    %5 = math.exp %4 : vector<64x64xf32>
    %cst_3 = arith.constant 1.000000e+00 : f32
    %6 = vector.broadcast %cst_3 : f32 to vector<64x64xf32>
    %7 = arith.addf %6, %5 : vector<64x64xf32>
    %8 = arith.divf %6, %7 : vector<64x64xf32>
    %9 = arith.mulf %3, %8 : vector<64x64xf32>
    %10 = arith.truncf %9 : vector<64x64xf32> to vector<64x64xbf16>
    %c0_4 = arith.constant 0 : index
    %c0_5 = arith.constant 0 : index
    %11 = vector.load %arg3[%c0_4, %c0_5] : memref<64x32xbf16, #tpu.memory_space<vmem>>, vector<64x32xbf16>
    %cst_6 = arith.constant dense<0.000000e+00> : vector<64x32xf32>
    %12 = tpu.matmul %10, %11, %cst_6 {dimension_numbers = #tpu.dot_dimension_numbers<[1], [0], [0], [1], [0, 0, 1, 1], [], []>} : vector<64x64xbf16>, vector<64x32xbf16>, vector<64x32xf32> -> vector<64x32xf32>
    %cst_7 = arith.constant dense<0.000000e+00> : vector<64xf32>
    %13 = vector.multi_reduction <add>, %12, %cst_7 [1] : vector<64x32xf32> to vector<64xf32>
    %14 = vector.shape_cast %13 : vector<64xf32> to vector<64x1xf32>
    %15 = arith.mulf %12, %12 : vector<64x32xf32>
    %cst_8 = arith.constant dense<0.000000e+00> : vector<64xf32>
    %16 = vector.multi_reduction <add>, %15, %cst_8 [1] : vector<64x32xf32> to vector<64xf32>
    %17 = vector.shape_cast %16 : vector<64xf32> to vector<64x1xf32>
    %cst_9 = arith.constant 3.125000e-02 : f32
    %18 = vector.broadcast %cst_9 : f32 to vector<64x1xf32>
    %19 = arith.mulf %14, %18 : vector<64x1xf32>
    %cst_10 = arith.constant 3.125000e-02 : f32
    %20 = vector.broadcast %cst_10 : f32 to vector<64x1xf32>
    %21 = arith.mulf %17, %20 : vector<64x1xf32>
    %22 = arith.mulf %19, %19 : vector<64x1xf32>
    %23 = arith.subf %21, %22 : vector<64x1xf32>
    %cst_11 = arith.constant 0.000000e+00 : f32
    %24 = vector.broadcast %cst_11 : f32 to vector<64x1xf32>
    %25 = arith.maximumf %23, %24 : vector<64x1xf32>
    %26 = vector.broadcast %19 : vector<64x1xf32> to vector<64x32xf32>
    %27 = arith.subf %12, %26 : vector<64x32xf32>
    %cst_12 = arith.constant 9.99999974E-6 : f32
    %28 = vector.broadcast %cst_12 : f32 to vector<64x1xf32>
    %29 = arith.addf %25, %28 : vector<64x1xf32>
    %30 = math.rsqrt %29 : vector<64x1xf32>
    %31 = vector.broadcast %30 : vector<64x1xf32> to vector<64x32xf32>
    %32 = arith.mulf %27, %31 : vector<64x32xf32>
    %c0_13 = arith.constant 0 : index
    %c0_14 = arith.constant 0 : index
    %33 = vector.load %arg4[%c0_13, %c0_14] : memref<1x32xf32, #tpu.memory_space<vmem>>, vector<1x32xf32>
    %34 = vector.broadcast %33 : vector<1x32xf32> to vector<64x32xf32>
    %35 = arith.mulf %32, %34 : vector<64x32xf32>
    %c0_15 = arith.constant 0 : index
    %c0_16 = arith.constant 0 : index
    %36 = vector.load %arg5[%c0_15, %c0_16] : memref<1x32xf32, #tpu.memory_space<vmem>>, vector<1x32xf32>
    %37 = vector.broadcast %36 : vector<1x32xf32> to vector<64x32xf32>
    %38 = arith.addf %35, %37 : vector<64x32xf32>
    %c0_17 = arith.constant 0 : index
    %c0_18 = arith.constant 0 : index
    %39 = vector.load %arg6[%c0_17, %c0_18] : memref<64x32xf32, #tpu.memory_space<vmem>>, vector<64x32xf32>
    tpu.vector_store %arg6[%c0_17, %c0_18], %38 {strides = array<i32>} : memref<64x32xf32, #tpu.memory_space<vmem>>, vector<64x32xf32>,
    return
  }
  func.func @transform_0(%arg0: i32) -> (i32, i32) {
    %c0_i32 = arith.constant 0 : i32
    %c0_i32_0 = arith.constant 0 : i32
    return %arg0, %c0_i32 : i32, i32
  }
  func.func @transform_1(%arg0: i32) -> (i32, i32) {
    %c0_i32 = arith.constant 0 : i32
    %c0_i32_0 = arith.constant 0 : i32
    %c0_i32_1 = arith.constant 0 : i32
    return %c0_i32, %c0_i32_0 : i32, i32
  }
  func.func @transform_2(%arg0: i32) -> (i32, i32) {
    %c0_i32 = arith.constant 0 : i32
    %c0_i32_0 = arith.constant 0 : i32
    %c0_i32_1 = arith.constant 0 : i32
    return %c0_i32, %c0_i32_0 : i32, i32
  }
  func.func @transform_3(%arg0: i32) -> (i32, i32) {
    %c0_i32 = arith.constant 0 : i32
    %c0_i32_0 = arith.constant 0 : i32
    %c0_i32_1 = arith.constant 0 : i32
    return %c0_i32, %c0_i32_0 : i32, i32
  }
  func.func @transform_4(%arg0: i32) -> (i32, i32) {
    %c0_i32 = arith.constant 0 : i32
    %c0_i32_0 = arith.constant 0 : i32
    %c0_i32_1 = arith.constant 0 : i32
    return %c0_i32, %c0_i32_0 : i32, i32
  }
  func.func @transform_5(%arg0: i32) -> (i32, i32) {
    %c0_i32 = arith.constant 0 : i32
    %c0_i32_0 = arith.constant 0 : i32
    return %arg0, %c0_i32 : i32, i32
  }
}

</mosaic_0001>

<llo_original>
// kernel: mlp_net.1
$region0: #{mlp_net.1}
  #allocation0 [shape = 'u32[]', space=smem, size = 0x4, offset = 0x4, fixed_abs, tag = 'smem constant byte address 0x4 - core index']
  #allocation1 [shape = 'u32[144,128]{1,0:T(1,128)}', space=vmem, size = 0x12000, scoped, tag = 'internal scratch']
  %s0 = inlined_call_operand.vmem [shape: f32[64,32], index: 0, kind: input, shape index: {}]
  %s1 = inlined_call_operand.vmem [shape: bf16[32,64], index: 1, kind: input, shape index: {}]
  %s2 = inlined_call_operand.vmem [shape: bf16[64,32], index: 2, kind: input, shape index: {}]
  %s3 = inlined_call_operand.vmem [shape: f32[1,32], index: 3, kind: input, shape index: {}]
  %s4 = inlined_call_operand.vmem [shape: f32[1,32], index: 4, kind: input, shape index: {}]
  %s5 = inlined_call_operand.vmem [shape: f32[64,32], index: 5, kind: output, shape index: {}]
  %s6 = sld [smem:[#allocation0]]
  $region30: #{mlp_net.1} parent=0
    _
  %s8 = ssub.s32 1, %s6
  %s9 = scalar_select 0, %s8, %s6
  // Predicated region
  $region2: #{mlp_net.1} parent=0 // pred_check
    _
  $region3: #{mlp_net.1} parent=0 // pred_check_branch
    %11 = sbr.rel (0) target = $region5
  $region4: #{mlp_net.1} parent=0 // pred_region
    _
  $region5: #{mlp_net.1} parent=0 // pred_fallthru
    _
  // Predicated region
  $region6: #{mlp_net.1} parent=0 // pred_check
    _
  $region7: #{mlp_net.1} parent=0 // pred_check_branch
    %13 = sbr.rel (0) target = $region9
  $region8: #{mlp_net.1} parent=0 // pred_region
    _
  $region9: #{mlp_net.1} parent=0 // pred_fallthru
    _
  // Predicated region
  $region10: #{mlp_net.1} parent=0 // pred_check
    _
  $region11: #{mlp_net.1} parent=0 // pred_check_branch
    %15 = sbr.rel (0) target = $region13
  $region12: #{mlp_net.1} parent=0 // pred_region
    _
  $region13: #{mlp_net.1} parent=0 // pred_fallthru
    _
  // Predicated region
  $region14: #{mlp_net.1} parent=0 // pred_check
    _
  $region15: #{mlp_net.1} parent=0 // pred_check_branch
    %17 = sbr.rel (0) target = $region17
  $region16: #{mlp_net.1} parent=0 // pred_region
    _
  $region17: #{mlp_net.1} parent=0 // pred_fallthru
    _
  // Predicated region
  $region18: #{mlp_net.1} parent=0 // pred_check
    _
  $region19: #{mlp_net.1} parent=0 // pred_check_branch
    %19 = sbr.rel (0) target = $region21
  $region20: #{mlp_net.1} parent=0 // pred_region
    _
  $region21: #{mlp_net.1} parent=0 // pred_fallthru
    _
  %v21 = vld [vmem:[%s0] sm:$0xff]
  %v22 = vld [vmem:[%s0 + $0x8] sm:$0xff]
  %v23 = vld [vmem:[%s0 + $0x10] sm:$0xff]
  %v24 = vld [vmem:[%s0 + $0x18] sm:$0xff]
  %v25 = vld [vmem:[%s0 + $0x20] sm:$0xff]
  %v26 = vld [vmem:[%s0 + $0x28] sm:$0xff]
  %v27 = vld [vmem:[%s0 + $0x30] sm:$0xff]
  %v28 = vld [vmem:[%s0 + $0x38] sm:$0xff]
  %v29 = vpack.c.bf16 %v22, %v21
  %v30 = vpack.c.bf16 %v24, %v23
  %v31 = vpack.c.bf16 %v26, %v25
  %v32 = vpack.c.bf16 %v28, %v27
  %v33 = vld [vmem:[%s1] sm:$0xf]
  %v34 = vld [vmem:[%s1 + $0x4] sm:$0xf]
  %v35 = vld [vmem:[%s1 + $0x8] sm:$0xf]
  %v36 = vld [vmem:[%s1 + $0xc] sm:$0xf]
  %v41 = vunpack.c.l.b16 %v33
  %v42 = vunpack.c.l.b16 %v34
  %v43 = vunpack.c.l.b16 %v35
  %v44 = vunpack.c.l.b16 %v36
  %v45 = vpack.c.b16 %v42, %v41
  %v46 = vpack.c.b16 %v44, %v43
  %vm49 = vcmask 261120
  %v51 = vsel %vm49, %v29, 0
  %v54 = vsel %vm49, %v30, 0
  %v57 = vsel %vm49, %v31, 0
  %v60 = vsel %vm49, %v32, 0
  %62 = vmatprep.subr.bf16.mxu0 0
  %63 = vmatpush1.bf16.msra.mxu0 %v45
  %64 = vmatprep.subr.bf16.mxu0 0
  %65 = vmatpush1.bf16.msra.mxu0 %v46
  %66 = vmatprep.subr.bf16.mxu0 0
  %67 = vmatpush1.bf16.msra.mxu0 0
  %68 = vmatprep.subr.bf16.mxu0 0
  %69 = vmatpush1.bf16.msra.mxu0 0
  %70 = vmatprep.subr.bf16.mxu0 0
  %71 = vmatpush1.bf16.msra.mxu0 0
  %72 = vmatprep.subr.bf16.mxu0 0
  %73 = vmatpush1.bf16.msra.mxu0 0
  %74 = vmatprep.subr.bf16.mxu0 0
  %75 = vmatpush1.bf16.msra.mxu0 0
  %76 = vmatprep.subr.bf16.mxu0 0
  %77 = vmatpush1.bf16.msra.mxu0 0
  %78 = vmatprep.subr.bf16.mxu0 0
  %79 = vmatpush1.bf16.msra.mxu0 0
  %80 = vmatprep.subr.bf16.mxu0 0
  %81 = vmatpush1.bf16.msra.mxu0 0
  %82 = vmatprep.subr.bf16.mxu0 0
  %83 = vmatpush1.bf16.msra.mxu0 0
  %84 = vmatprep.subr.bf16.mxu0 0
  %85 = vmatpush1.bf16.msra.mxu0 0
  %86 = vmatprep.subr.bf16.mxu0 0
  %87 = vmatpush1.bf16.msra.mxu0 0
  %88 = vmatprep.subr.bf16.mxu0 0
  %89 = vmatpush1.bf16.msra.mxu0 0
  %90 = vmatprep.subr.bf16.mxu0 0
  %91 = vmatpush1.bf16.msra.mxu0 0
  %92 = vmatprep.subr.bf16.mxu0 0
  %93 = vmatpush1.bf16.msra.mxu0 0
  %94 = vmatprep.mubr.bf16.mxu0 0
  %95 = vmatmul.mubr.bf16.gmra.mrb[0].mxu0 %v51
  %v96 = vpop.f32.mrb[0].mxu0
  %v97 = vadd.f32 0.0, %v96
  %v98 = vpop.f32.mrb[0].mxu0
  %v99 = vpop.f32.mrb[0].mxu0
  %v100 = vadd.f32 0.0, %v99
  %v101 = vpop.f32.mrb[0].mxu0
  %102 = vmatprep.mubr.bf16.mxu0 0
  %103 = vmatmul.mubr.bf16.gmra.mrb[0].mxu0 %v54
  %v104 = vpop.f32.mrb[0].mxu0
  %v105 = vadd.f32 0.0, %v104
  %v106 = vpop.f32.mrb[0].mxu0
  %v107 = vpop.f32.mrb[0].mxu0
  %v108 = vadd.f32 0.0, %v107
  %v109 = vpop.f32.mrb[0].mxu0
  %110 = vmatprep.mubr.bf16.mxu0 0
  %111 = vmatmul.mubr.bf16.gmra.mrb[0].mxu0 %v57
  %v112 = vpop.f32.mrb[0].mxu0
  %v113 = vadd.f32 0.0, %v112
  %v114 = vpop.f32.mrb[0].mxu0
  %v115 = vpop.f32.mrb[0].mxu0
  %v116 = vadd.f32 0.0, %v115
  %v117 = vpop.f32.mrb[0].mxu0
  %118 = vmatprep.mubr.bf16.mxu0 0
  %119 = vmatmul.mubr.bf16.gmra.mrb[0].mxu0 %v60
  %v120 = vpop.f32.mrb[0].mxu0
  %v121 = vadd.f32 0.0, %v120
  %v122 = vpop.f32.mrb[0].mxu0
  %v123 = vpop.f32.mrb[0].mxu0
  %v124 = vadd.f32 0.0, %v123
  %v125 = vpop.f32.mrb[0].mxu0
  %126 = vdwg.mxu0
  %v127 = vxor.u32 %v97, 2147483648
  %v128 = vxor.u32 %v100, 2147483648
  %v129 = vxor.u32 %v105, 2147483648
  %v130 = vxor.u32 %v108, 2147483648
  %v131 = vxor.u32 %v113, 2147483648
  %v132 = vxor.u32 %v116, 2147483648
  %v133 = vxor.u32 %v121, 2147483648
  %v134 = vxor.u32 %v124, 2147483648
  %v135 = vmul.f32 %v127, 1.442695
  %v136 = vpow.pop %v135
  %v137 = vmul.f32 %v128, 1.442695
  %v138 = vpow.pop %v137
  %v139 = vmul.f32 %v129, 1.442695
  %v140 = vpow.pop %v139
  %v141 = vmul.f32 %v130, 1.442695
  %v142 = vpow.pop %v141
  %v143 = vmul.f32 %v131, 1.442695
  %v144 = vpow.pop %v143
  %v145 = vmul.f32 %v132, 1.442695
  %v146 = vpow.pop %v145
  %v147 = vmul.f32 %v133, 1.442695
  %v148 = vpow.pop %v147
  %v149 = vmul.f32 %v134, 1.442695
  %v150 = vpow.pop %v149
  %v151 = vadd.f32 %v136, 1.0
  %v152 = vadd.f32 %v138, 1.0
  %v153 = vadd.f32 %v140, 1.0
  %v154 = vadd.f32 %v142, 1.0
  %v155 = vadd.f32 %v144, 1.0
  %v156 = vadd.f32 %v146, 1.0
  %v157 = vadd.f32 %v148, 1.0
  %v158 = vadd.f32 %v150, 1.0
  %v159 = vrcp.pop %v151
  %v160 = vmul.f32 1.0, %v159
  %v161 = vrcp.pop %v152
  %v162 = vmul.f32 1.0, %v161
  %v163 = vrcp.pop %v153
  %v164 = vmul.f32 1.0, %v163
  %v165 = vrcp.pop %v154
  %v166 = vmul.f32 1.0, %v165
  %v167 = vrcp.pop %v155
  %v168 = vmul.f32 1.0, %v167
  %v169 = vrcp.pop %v156
  %v170 = vmul.f32 1.0, %v169
  %v171 = vrcp.pop %v157
  %v172 = vmul.f32 1.0, %v171
  %v173 = vrcp.pop %v158
  %v174 = vmul.f32 1.0, %v173
  %v175 = vmul.f32 %v97, %v160
  %v176 = vmul.f32 %v100, %v162
  %v177 = vmul.f32 %v105, %v164
  %v178 = vmul.f32 %v108, %v166
  %v179 = vmul.f32 %v113, %v168
  %v180 = vmul.f32 %v116, %v170
  %v181 = vmul.f32 %v121, %v172
  %v182 = vmul.f32 %v124, %v174
  %v183 = vpack.c.bf16 %v176, %v175
  %v184 = vpack.c.bf16 %v178, %v177
  %v185 = vpack.c.bf16 %v180, %v179
  %v186 = vpack.c.bf16 %v182, %v181
  %v187 = vld [vmem:[%s2] sm:$0xf]
  %v188 = vld [vmem:[%s2 + $0x4] sm:$0xf]
  %v189 = vld [vmem:[%s2 + $0x8] sm:$0xf]
  %v190 = vld [vmem:[%s2 + $0xc] sm:$0xf]
  %v191 = vld [vmem:[%s2 + $0x10] sm:$0xf]
  %v192 = vld [vmem:[%s2 + $0x14] sm:$0xf]
  %v193 = vld [vmem:[%s2 + $0x18] sm:$0xf]
  %v194 = vld [vmem:[%s2 + $0x1c] sm:$0xf]
  %v203 = vunpack.c.l.b16 %v187
  %v204 = vunpack.c.l.b16 %v188
  %v205 = vunpack.c.l.b16 %v189
  %v206 = vunpack.c.l.b16 %v190
  %v207 = vunpack.c.l.b16 %v191
  %v208 = vunpack.c.l.b16 %v192
  %v209 = vunpack.c.l.b16 %v193
  %v210 = vunpack.c.l.b16 %v194
  %v211 = vpack.c.b16 %v204, %v203
  %v212 = vpack.c.b16 %v206, %v205
  %v213 = vpack.c.b16 %v208, %v207
  %v214 = vpack.c.b16 %v210, %v209
  %vm219 = vcmask 523264
  %v221 = vsel %vm219, %v183, 0
  %v224 = vsel %vm219, %v184, 0
  %v227 = vsel %vm219, %v185, 0
  %v230 = vsel %vm219, %v186, 0
  %232 = vmatprep.subr.bf16.mxu0 0
  %233 = vmatpush1.bf16.msra.mxu0 %v211
  %234 = vmatprep.subr.bf16.mxu0 0
  %235 = vmatpush1.bf16.msra.mxu0 %v212
  %236 = vmatprep.subr.bf16.mxu0 0
  %237 = vmatpush1.bf16.msra.mxu0 %v213
  %238 = vmatprep.subr.bf16.mxu0 0
  %239 = vmatpush1.bf16.msra.mxu0 %v214
  %240 = vmatprep.subr.bf16.mxu0 0
  %241 = vmatpush1.bf16.msra.mxu0 0
  %242 = vmatprep.subr.bf16.mxu0 0
  %243 = vmatpush1.bf16.msra.mxu0 0
  %244 = vmatprep.subr.bf16.mxu0 0
  %245 = vmatpush1.bf16.msra.mxu0 0
  %246 = vmatprep.subr.bf16.mxu0 0
  %247 = vmatpush1.bf16.msra.mxu0 0
  %248 = vmatprep.subr.bf16.mxu0 0
  %249 = vmatpush1.bf16.msra.mxu0 0
  %250 = vmatprep.subr.bf16.mxu0 0
  %251 = vmatpush1.bf16.msra.mxu0 0
  %252 = vmatprep.subr.bf16.mxu0 0
  %253 = vmatpush1.bf16.msra.mxu0 0
  %254 = vmatprep.subr.bf16.mxu0 0
  %255 = vmatpush1.bf16.msra.mxu0 0
  %256 = vmatprep.subr.bf16.mxu0 0
  %257 = vmatpush1.bf16.msra.mxu0 0
  %258 = vmatprep.subr.bf16.mxu0 0
  %259 = vmatpush1.bf16.msra.mxu0 0
  %260 = vmatprep.subr.bf16.mxu0 0
  %261 = vmatpush1.bf16.msra.mxu0 0
  %262 = vmatprep.subr.bf16.mxu0 0
  %263 = vmatpush1.bf16.msra.mxu0 0
  %264 = vmatprep.mubr.bf16.mxu0 0
  %265 = vmatmul.mubr.bf16.gmra.mrb[0].mxu0 %v221
  %v266 = vpop.f32.mrb[0].mxu0
  %v267 = vadd.f32 0.0, %v266
  %v268 = vpop.f32.mrb[0].mxu0
  %v269 = vpop.f32.mrb[0].mxu0
  %v270 = vadd.f32 0.0, %v269
  %v271 = vpop.f32.mrb[0].mxu0
  %272 = vmatprep.mubr.bf16.mxu0 0
  %273 = vmatmul.mubr.bf16.gmra.mrb[0].mxu0 %v224
  %v274 = vpop.f32.mrb[0].mxu0
  %v275 = vadd.f32 0.0, %v274
  %v276 = vpop.f32.mrb[0].mxu0
  %v277 = vpop.f32.mrb[0].mxu0
  %v278 = vadd.f32 0.0, %v277
  %v279 = vpop.f32.mrb[0].mxu0
  %280 = vmatprep.mubr.bf16.mxu0 0
  %281 = vmatmul.mubr.bf16.gmra.mrb[0].mxu0 %v227
  %v282 = vpop.f32.mrb[0].mxu0
  %v283 = vadd.f32 0.0, %v282
  %v284 = vpop.f32.mrb[0].mxu0
  %v285 = vpop.f32.mrb[0].mxu0
  %v286 = vadd.f32 0.0, %v285
  %v287 = vpop.f32.mrb[0].mxu0
  %288 = vmatprep.mubr.bf16.mxu0 0
  %289 = vmatmul.mubr.bf16.gmra.mrb[0].mxu0 %v230
  %v290 = vpop.f32.mrb[0].mxu0
  %v291 = vadd.f32 0.0, %v290
  %v292 = vpop.f32.mrb[0].mxu0
  %v293 = vpop.f32.mrb[0].mxu0
  %v294 = vadd.f32 0.0, %v293
  %v295 = vpop.f32.mrb[0].mxu0
  %296 = vdwg.mxu0
  %v297 = vsel %vm49, %v267, 0.0
  %298 = vadd.xlane.f32.xlu0 %v297
  %v299 = vpop.xlane.xlu0 %298
  %v300 = vsel %vm49, %v270, 0.0
  %301 = vadd.xlane.f32.xlu0 %v300
  %v302 = vpop.xlane.xlu0 %301
  %v303 = vsel %vm49, %v275, 0.0
  %304 = vadd.xlane.f32.xlu0 %v303
  %v305 = vpop.xlane.xlu0 %304
  %v306 = vsel %vm49, %v278, 0.0
  %307 = vadd.xlane.f32.xlu0 %v306
  %v308 = vpop.xlane.xlu0 %307
  %v309 = vsel %vm49, %v283, 0.0
  %310 = vadd.xlane.f32.xlu0 %v309
  %v311 = vpop.xlane.xlu0 %310
  %v312 = vsel %vm49, %v286, 0.0
  %313 = vadd.xlane.f32.xlu0 %v312
  %v314 = vpop.xlane.xlu0 %313
  %v315 = vsel %vm49, %v291, 0.0
  %316 = vadd.xlane.f32.xlu0 %v315
  %v317 = vpop.xlane.xlu0 %316
  %v318 = vsel %vm49, %v294, 0.0
  %319 = vadd.xlane.f32.xlu0 %v318
  %v320 = vpop.xlane.xlu0 %319
  %v321 = vmul.f32 %v267, %v267
  %v322 = vmul.f32 %v270, %v270
  %v323 = vmul.f32 %v275, %v275
  %v324 = vmul.f32 %v278, %v278
  %v325 = vmul.f32 %v283, %v283
  %v326 = vmul.f32 %v286, %v286
  %v327 = vmul.f32 %v291, %v291
  %v328 = vmul.f32 %v294, %v294
  %v329 = vsel %vm49, %v321, 0.0
  %330 = vadd.xlane.f32.xlu0 %v329
  %v331 = vpop.xlane.xlu0 %330
  %v332 = vsel %vm49, %v322, 0.0
  %333 = vadd.xlane.f32.xlu0 %v332
  %v334 = vpop.xlane.xlu0 %333
  %v335 = vsel %vm49, %v323, 0.0
  %336 = vadd.xlane.f32.xlu0 %v335
  %v337 = vpop.xlane.xlu0 %336
  %v338 = vsel %vm49, %v324, 0.0
  %339 = vadd.xlane.f32.xlu0 %v338
  %v340 = vpop.xlane.xlu0 %339
  %v341 = vsel %vm49, %v325, 0.0
  %342 = vadd.xlane.f32.xlu0 %v341
  %v343 = vpop.xlane.xlu0 %342
  %v344 = vsel %vm49, %v326, 0.0
  %345 = vadd.xlane.f32.xlu0 %v344
  %v346 = vpop.xlane.xlu0 %345
  %v347 = vsel %vm49, %v327, 0.0
  %348 = vadd.xlane.f32.xlu0 %v347
  %v349 = vpop.xlane.xlu0 %348
  %v350 = vsel %vm49, %v328, 0.0
  %351 = vadd.xlane.f32.xlu0 %v350
  %v352 = vpop.xlane.xlu0 %351
  %v353 = vmul.f32 %v299, 0.03125
  %v354 = vmul.f32 %v302, 0.03125
  %v355 = vmul.f32 %v305, 0.03125
  %v356 = vmul.f32 %v308, 0.03125
  %v357 = vmul.f32 %v311, 0.03125
  %v358 = vmul.f32 %v314, 0.03125
  %v359 = vmul.f32 %v317, 0.03125
  %v360 = vmul.f32 %v320, 0.03125
  %v361 = vmul.f32 %v331, 0.03125
  %v362 = vmul.f32 %v334, 0.03125
  %v363 = vmul.f32 %v337, 0.03125
  %v364 = vmul.f32 %v340, 0.03125
  %v365 = vmul.f32 %v343, 0.03125
  %v366 = vmul.f32 %v346, 0.03125
  %v367 = vmul.f32 %v349, 0.03125
  %v368 = vmul.f32 %v352, 0.03125
  %v369 = vmul.f32 %v353, %v353
  %v370 = vmul.f32 %v354, %v354
  %v371 = vmul.f32 %v355, %v355
  %v372 = vmul.f32 %v356, %v356
  %v373 = vmul.f32 %v357, %v357
  %v374 = vmul.f32 %v358, %v358
  %v375 = vmul.f32 %v359, %v359
  %v376 = vmul.f32 %v360, %v360
  %v377 = vsub.f32 %v361, %v369
  %v378 = vsub.f32 %v362, %v370
  %v379 = vsub.f32 %v363, %v371
  %v380 = vsub.f32 %v364, %v372
  %v381 = vsub.f32 %v365, %v373
  %v382 = vsub.f32 %v366, %v374
  %v383 = vsub.f32 %v367, %v375
  %v384 = vsub.f32 %v368, %v376
  %v385 = vmax.f32 %v377, 0.0
  %v386 = vmax.f32 %v378, 0.0
  %v387 = vmax.f32 %v379, 0.0
  %v388 = vmax.f32 %v380, 0.0
  %v389 = vmax.f32 %v381, 0.0
  %v390 = vmax.f32 %v382, 0.0
  %v391 = vmax.f32 %v383, 0.0
  %v392 = vmax.f32 %v384, 0.0
  %v393 = vsub.f32 %v267, %v353
  %v394 = vsub.f32 %v270, %v354
  %v395 = vsub.f32 %v275, %v355
  %v396 = vsub.f32 %v278, %v356
  %v397 = vsub.f32 %v283, %v357
  %v398 = vsub.f32 %v286, %v358
  %v399 = vsub.f32 %v291, %v359
  %v400 = vsub.f32 %v294, %v360
  %v401 = vadd.f32 %v385, 1e-05
  %v402 = vadd.f32 %v386, 1e-05
  %v403 = vadd.f32 %v387, 1e-05
  %v404 = vadd.f32 %v388, 1e-05
  %v405 = vadd.f32 %v389, 1e-05
  %v406 = vadd.f32 %v390, 1e-05
  %v407 = vadd.f32 %v391, 1e-05
  %v408 = vadd.f32 %v392, 1e-05
  %v409 = vrsqrt.pop %v401
  %v410 = vrsqrt.pop %v402
  %v411 = vrsqrt.pop %v403
  %v412 = vrsqrt.pop %v404
  %v413 = vrsqrt.pop %v405
  %v414 = vrsqrt.pop %v406
  %v415 = vrsqrt.pop %v407
  %v416 = vrsqrt.pop %v408
  %v417 = vmul.f32 %v393, %v409
  %v418 = vmul.f32 %v394, %v410
  %v419 = vmul.f32 %v395, %v411
  %v420 = vmul.f32 %v396, %v412
  %v421 = vmul.f32 %v397, %v413
  %v422 = vmul.f32 %v398, %v414
  %v423 = vmul.f32 %v399, %v415
  %v424 = vmul.f32 %v400, %v416
  %v425 = vld [vmem:[%s3] sm:$0x1]
  %v427 = vlaneseq
  %v428 = vshrl.u32 %v427, 7
  %v429 = vsub.s32 0, %v428
  %v430 = vrot.slane %v425, %v429
  %v432 = vmul.f32 %v417, %v430
  %v433 = vmul.f32 %v418, %v430
  %v434 = vmul.f32 %v419, %v430
  %v435 = vmul.f32 %v420, %v430
  %v436 = vmul.f32 %v421, %v430
  %v437 = vmul.f32 %v422, %v430
  %v438 = vmul.f32 %v423, %v430
  %v439 = vmul.f32 %v424, %v430
  %v440 = vld [vmem:[%s4] sm:$0x1]
  %v442 = vlaneseq
  %v443 = vshrl.u32 %v442, 7
  %v444 = vsub.s32 0, %v443
  %v445 = vrot.slane %v440, %v444
  %v447 = vadd.f32 %v432, %v445
  %v448 = vadd.f32 %v433, %v445
  %v449 = vadd.f32 %v434, %v445
  %v450 = vadd.f32 %v435, %v445
  %v451 = vadd.f32 %v436, %v445
  %v452 = vadd.f32 %v437, %v445
  %v453 = vadd.f32 %v438, %v445
  %v454 = vadd.f32 %v439, %v445
  %455 = vst.msk [vmem:[%s5] sm:$0xff] %vm49, %v447
  %456 = vst.msk [vmem:[%s5 + $0x8] sm:$0xff] %vm49, %v448
  %457 = vst.msk [vmem:[%s5 + $0x10] sm:$0xff] %vm49, %v449
  %458 = vst.msk [vmem:[%s5 + $0x18] sm:$0xff] %vm49, %v450
  %459 = vst.msk [vmem:[%s5 + $0x20] sm:$0xff] %vm49, %v451
  %460 = vst.msk [vmem:[%s5 + $0x28] sm:$0xff] %vm49, %v452
  %461 = vst.msk [vmem:[%s5 + $0x30] sm:$0xff] %vm49, %v453
  %462 = vst.msk [vmem:[%s5 + $0x38] sm:$0xff] %vm49, %v454
  // Predicated region
  $region22: #{mlp_net.1} parent=0 // pred_check
    _
  $region23: #{mlp_net.1} parent=0 // pred_check_branch
    %464 = sbr.rel (0) target = $region25
  $region24: #{mlp_net.1} parent=0 // pred_region
    _
  $region25: #{mlp_net.1} parent=0 // pred_fallthru
    _
  // Predicated region
  $region26: #{mlp_net.1} parent=0 // pred_check
    _
  $region27: #{mlp_net.1} parent=0 // pred_check_branch
    %466 = sbr.rel (0) target = $region29
  $region28: #{mlp_net.1} parent=0 // pred_region
    _
  $region29: #{mlp_net.1} parent=0 // pred_fallthru
    _

</llo_original>
